<compile_context>
chip_gen: v6e
topology: v6e:2x2x1
jax: 0.10.0
libtpu: 0.0.40
codegen_flags: <defaults>
</compile_context>

<pallas_src>
import jax
import jax.numpy as jnp
from jax.experimental import pallas as pl
from jax.experimental.pallas import tpu as pltpu


def _rev_block_kernel(x_ref, wf_ref, bf_ref, wg_ref, bg_ref, y_ref):
    """One row-tile of the reversible block.

    x_ref          : (tm, 2*D)  fused input tile  [x1 | x2]
    wf_ref, wg_ref : (D, D)     weights of f and g (resident across the grid)
    bf_ref, bg_ref : (1, D)     biases of f and g
    y_ref          : (tm, 2*D)  fused output tile [y1 | y2]
    """
    D = wf_ref.shape[1]

    if D % 128 == 0:
        # Lane-aligned split: read each half straight from the ref (no
        # full-tile materialization, no cross-lane shuffles).
        x1 = x_ref[:, :D]
        x2 = x_ref[:, D:]
    else:
        # Non-lane-aligned split: load the fused tile once and slice the value.
        x = x_ref[...]
        x1 = x[:, :D]
        x2 = x[:, D:]

    # y1 = x1 + f(x2), f = Linear(D, D); MXU at operand dtype, f32 accumulate.
    f_out = jnp.dot(x2, wf_ref[...], preferred_element_type=jnp.float32)
    y1_f32 = x1.astype(jnp.float32) + f_out + bf_ref[...].astype(jnp.float32)

    # Store y1 (already in output dtype) BEFORE the second matmul so the f32
    # copy of y1 is dead across the g dot -> fewer live tile-sized temporaries.
    g_in = y1_f32.astype(y_ref.dtype)
    y_ref[:, :D] = g_in

    # y2 = x2 + g(y1), g = Linear(D, D); feed y1 at operand dtype.
    g_out = jnp.dot(g_in, wg_ref[...], preferred_element_type=jnp.float32)
    y2 = x2.astype(jnp.float32) + g_out + bg_ref[...].astype(jnp.float32)
    y_ref[:, D:] = y2.astype(y_ref.dtype)


def _round_up(x, m):
    return ((x + m - 1) // m) * m


def _tpu_vmem_capacity_bytes():
    """Physical per-core VMEM, with a conservative fallback."""
    try:
        return int(pltpu.get_tpu_info().vmem_capacity_bytes)
    except Exception:
        return 64 << 20     # v7x per-TensorCore VMEM (smallest of v5e/v6e/v7x)


def _pick_tm(M, D, dtype, vmem_budget_bytes):
    """Row tile sized by bytes, not by a fixed row cap.

    Accounts for double-buffered fused (tm, 2D) in/out tiles, resident weight
    slabs (conservatively 2 buffers each) and ~3 (tm, D) f32 temporaries in
    the kernel body.  Soft target of ~8 MiB per fused activation buffer to
    amortize the ~0.35 us per-grid-step overhead.  Always leaves >= 2 grid
    steps when possible so the second TensorCore on v7x has work.
    """
    itemsize = jnp.dtype(dtype).itemsize
    # Sublane multiple: 8 for f32, 16 for bf16, 32 for int8/fp8.
    sub = max(8, 32 // itemsize)

    weight_bytes = (4 * D * D + 4 * D) * itemsize
    avail = max(vmem_budget_bytes - weight_bytes, 4 << 20)

    per_row = 8 * D * itemsize + 3 * D * 4      # 2x2 fused tiles + f32 temps
    tm_budget = avail // per_row
    tm_target = (8 << 20) // (2 * D * itemsize)  # ~8 MiB per fused buffer

    tm = int(min(tm_budget, tm_target))
    tm = max(sub, (tm // sub) * sub)
    tm = min(tm, _round_up(M, sub))

    # Ensure at least 2 grid steps when the problem is big enough to split.
    two_block = _round_up(pl.cdiv(M, 2), sub)
    if two_block < M:
        tm = min(tm, two_block)
    return int(tm)


def reversible_block_forward(x, wf, bf, wg, bg, *, tm=None):
    """x: [B, S, 2*D] -> y: [B, S, 2*D].  Weights in JAX [in, out] layout."""
    B, S, H2 = x.shape
    assert H2 % 2 == 0
    D = H2 // 2
    M = B * S

    itemsize = jnp.dtype(x.dtype).itemsize
    sub = max(8, 32 // itemsize)

    # Generation-aware VMEM accounting: ~56 MiB limit on v7x (64 MiB phys),
    # ~112 MiB on v5e/v6e (128 MiB phys); the tile budget leaves extra slack
    # for compiler-internal scratch.
    vmem_cap = _tpu_vmem_capacity_bytes()
    vmem_limit = int(vmem_cap - vmem_cap // 8)
    tile_budget = max(vmem_limit - (8 << 20), 8 << 20)

    if tm is None:
        tm = _pick_tm(M, D, x.dtype, tile_budget)
    else:
        tm = max(sub, _round_up(int(tm), sub))
        tm = min(tm, _round_up(M, sub))

    # Free (contiguous) reshape: no extra HBM pass, no per-half slicing here.
    x2d = x.reshape(M, 2 * D)
    bf2 = bf.reshape(1, D)
    bg2 = bg.reshape(1, D)

    # Ragged last block is masked by Pallas -> no divisor constraints on M.
    grid = (pl.cdiv(M, tm),)

    x_spec = pl.BlockSpec((tm, 2 * D), lambda i: (i, 0))
    y_spec = pl.BlockSpec((tm, 2 * D), lambda i: (i, 0))
    # Constant index maps -> weights/biases fetched once and kept resident.
    w_spec = pl.BlockSpec((D, D), lambda i: (0, 0))
    b_spec = pl.BlockSpec((1, D), lambda i: (0, 0))

    flops = 4 * M * D * D                        # two (M,D)x(D,D) matmuls
    bytes_accessed = (2 * M * 2 * D + 2 * D * D + 2 * D) * itemsize

    y2d = pl.pallas_call(
        _rev_block_kernel,
        out_shape=jax.ShapeDtypeStruct((M, 2 * D), x.dtype),
        grid_spec=pltpu.PrefetchScalarGridSpec(
            num_scalar_prefetch=0,
            grid=grid,
            in_specs=[x_spec, w_spec, b_spec, w_spec, b_spec],
            out_specs=y_spec,
        ),
        compiler_params=pltpu.CompilerParams(
            dimension_semantics=("parallel",),
            vmem_limit_bytes=vmem_limit,
        ),
        cost_estimate=pl.CostEstimate(
            flops=flops, transcendentals=0, bytes_accessed=bytes_accessed),
    )(x2d, wf, bf2, wg, bg2)

    return y2d.reshape(B, S, 2 * D)


def reversible_block_reference(x, wf, bf, wg, bg):
    """Pure-JAX reference of the same forward semantics."""
    D = x.shape[-1] // 2
    x1, x2 = x[..., :D], x[..., D:]
    y1 = x1 + (x2 @ wf + bf)
    y2 = x2 + (y1 @ wg + bg)
    return jnp.concatenate([y1, y2], axis=2)


if __name__ == "__main__":
    key = jax.random.PRNGKey(0)

    # --- small config matching the module's toy use: x is [B, S, 2*D] ---
    B, S, D = 2, 8, 32
    kx, kwf, kbf, kwg, kbg = jax.random.split(key, 5)
    x = jax.random.normal(kx, (B, S, 2 * D), dtype=jnp.float32)
    wf = jax.random.normal(kwf, (D, D), dtype=jnp.float32) * 0.02
    bf = jax.random.normal(kbf, (D,), dtype=jnp.float32) * 0.02
    wg = jax.random.normal(kwg, (D, D), dtype=jnp.float32) * 0.02
    bg = jax.random.normal(kbg, (D,), dtype=jnp.float32) * 0.02

    y = jax.block_until_ready(reversible_block_forward(x, wf, bf, wg, bg))
    y_ref = reversible_block_reference(x, wf, bf, wg, bg)
    assert y.shape == (B, S, 2 * D)
    assert jnp.allclose(y, y_ref, atol=1e-5, rtol=1e-5)

    # --- full 128-lane tiles, multi-tile row grid (explicit tm=32) ---
    B2, S2, D2 = 2, 64, 128
    k2 = jax.random.split(key, 6)
    x2 = jax.random.normal(k2[0], (B2, S2, 2 * D2), dtype=jnp.float32)
    wf2 = jax.random.normal(k2[1], (D2, D2), dtype=jnp.float32) * 0.02
    bf2 = jax.random.normal(k2[2], (D2,), dtype=jnp.float32) * 0.02
    wg2 = jax.random.normal(k2[3], (D2, D2), dtype=jnp.float32) * 0.02
    bg2 = jax.random.normal(k2[4], (D2,), dtype=jnp.float32) * 0.02

    y2 = jax.block_until_ready(
        reversible_block_forward(x2, wf2, bf2, wg2, bg2, tm=32))
    y2_ref = reversible_block_reference(x2, wf2, bf2, wg2, bg2)
    assert jnp.allclose(y2, y2_ref, atol=1e-4, rtol=1e-4)

    # --- awkward row count (M=40): exercises cdiv grid + masked last block ---
    B3, S3, D3 = 1, 40, 128
    k3 = jax.random.split(key, 7)
    x3 = jax.random.normal(k3[0], (B3, S3, 2 * D3), dtype=jnp.float32)
    wf3 = jax.random.normal(k3[1], (D3, D3), dtype=jnp.float32) * 0.02
    bf3 = jax.random.normal(k3[2], (D3,), dtype=jnp.float32) * 0.02
    wg3 = jax.random.normal(k3[3], (D3, D3), dtype=jnp.float32) * 0.02
    bg3 = jax.random.normal(k3[4], (D3,), dtype=jnp.float32) * 0.02

    y3 = jax.block_until_ready(reversible_block_forward(x3, wf3, bf3, wg3, bg3))
    y3_ref = reversible_block_reference(x3, wf3, bf3, wg3, bg3)
    assert jnp.allclose(y3, y3_ref, atol=1e-4, rtol=1e-4)

    print("KERNEL_OK")
</pallas_src>

<mosaic_0001>
module attributes {stable_mosaic.version = 11 : i64} {
  func.func @_rev_block_kernel(%arg0: i32, %arg1: memref<8x64xf32, #tpu.memory_space<vmem>>, %arg2: memref<32x32xf32, #tpu.memory_space<vmem>>, %arg3: memref<1x32xf32, #tpu.memory_space<vmem>>, %arg4: memref<32x32xf32, #tpu.memory_space<vmem>>, %arg5: memref<1x32xf32, #tpu.memory_space<vmem>>, %arg6: memref<8x64xf32, #tpu.memory_space<vmem>>) attributes {dimension_semantics = [#tpu.dimension_semantics<parallel>], iteration_bounds = array<i64: 2>, scalar_prefetch = 0 : i64, scratch_operands = 0 : i64, tpu.core_type = #tpu.core_type<tc>, window_params = [{transform_indices = @transform_0, window_bounds = array<i64: 8, 64>}, {pipeline_mode = #tpu.pipeline_mode<synchronous>, transform_indices = @transform_1, window_bounds = array<i64: 32, 32>}, {pipeline_mode = #tpu.pipeline_mode<synchronous>, transform_indices = @transform_2, window_bounds = array<i64: 1, 32>}, {pipeline_mode = #tpu.pipeline_mode<synchronous>, transform_indices = @transform_3, window_bounds = array<i64: 32, 32>}, {pipeline_mode = #tpu.pipeline_mode<synchronous>, transform_indices = @transform_4, window_bounds = array<i64: 1, 32>}, {transform_indices = @transform_5, window_bounds = array<i64: 8, 64>}]} {
    %c0 = arith.constant 0 : index
    %c0_0 = arith.constant 0 : index
    %0 = vector.load %arg1[%c0, %c0_0] : memref<8x64xf32, #tpu.memory_space<vmem>>, vector<8x64xf32>
    %1 = vector.extract_strided_slice %0 {offsets = [0, 0], sizes = [8, 32], strides = [1, 1]} : vector<8x64xf32> to vector<8x32xf32>
    %2 = vector.extract_strided_slice %0 {offsets = [0, 32], sizes = [8, 32], strides = [1, 1]} : vector<8x64xf32> to vector<8x32xf32>
    %c0_1 = arith.constant 0 : index
    %c0_2 = arith.constant 0 : index
    %3 = vector.load %arg2[%c0_1, %c0_2] : memref<32x32xf32, #tpu.memory_space<vmem>>, vector<32x32xf32>
    %cst = arith.constant dense<0.000000e+00> : vector<8x32xf32>
    %4 = tpu.matmul %2, %3, %cst {dimension_numbers = #tpu.dot_dimension_numbers<[1], [0], [0], [1], [0, 0, 1, 1], [], []>} : vector<8x32xf32>, vector<32x32xf32>, vector<8x32xf32> -> vector<8x32xf32>
    %5 = arith.addf %1, %4 : vector<8x32xf32>
    %c0_3 = arith.constant 0 : index
    %c0_4 = arith.constant 0 : index
    %6 = vector.load %arg3[%c0_3, %c0_4] : memref<1x32xf32, #tpu.memory_space<vmem>>, vector<1x32xf32>
    %7 = vector.broadcast %6 : vector<1x32xf32> to vector<8x32xf32>
    %8 = arith.addf %5, %7 : vector<8x32xf32>
    %c0_5 = arith.constant 0 : index
    %c0_6 = arith.constant 0 : index
    %9 = vector.load %arg6[%c0_5, %c0_6] : memref<8x64xf32, #tpu.memory_space<vmem>>, vector<8x32xf32>
    tpu.vector_store %arg6[%c0_5, %c0_6], %8 {strides = array<i32>} : memref<8x64xf32, #tpu.memory_space<vmem>>, vector<8x32xf32>,
    %c0_7 = arith.constant 0 : index
    %c0_8 = arith.constant 0 : index
    %10 = vector.load %arg4[%c0_7, %c0_8] : memref<32x32xf32, #tpu.memory_space<vmem>>, vector<32x32xf32>
    %cst_9 = arith.constant dense<0.000000e+00> : vector<8x32xf32>
    %11 = tpu.matmul %8, %10, %cst_9 {dimension_numbers = #tpu.dot_dimension_numbers<[1], [0], [0], [1], [0, 0, 1, 1], [], []>} : vector<8x32xf32>, vector<32x32xf32>, vector<8x32xf32> -> vector<8x32xf32>
    %12 = arith.addf %2, %11 : vector<8x32xf32>
    %c0_10 = arith.constant 0 : index
    %c0_11 = arith.constant 0 : index
    %13 = vector.load %arg5[%c0_10, %c0_11] : memref<1x32xf32, #tpu.memory_space<vmem>>, vector<1x32xf32>
    %14 = vector.broadcast %13 : vector<1x32xf32> to vector<8x32xf32>
    %15 = arith.addf %12, %14 : vector<8x32xf32>
    %c0_12 = arith.constant 0 : index
    %c32 = arith.constant 32 : index
    %16 = vector.load %arg6[%c0_12, %c32] : memref<8x64xf32, #tpu.memory_space<vmem>>, vector<8x32xf32>
    tpu.vector_store %arg6[%c0_12, %c32], %15 {strides = array<i32>} : memref<8x64xf32, #tpu.memory_space<vmem>>, vector<8x32xf32>,
    return
  }
  func.func @transform_0(%arg0: i32) -> (i32, i32) {
    %c0_i32 = arith.constant 0 : i32
    %c0_i32_0 = arith.constant 0 : i32
    return %arg0, %c0_i32 : i32, i32
  }
  func.func @transform_1(%arg0: i32) -> (i32, i32) {
    %c0_i32 = arith.constant 0 : i32
    %c0_i32_0 = arith.constant 0 : i32
    %c0_i32_1 = arith.constant 0 : i32
    return %c0_i32, %c0_i32_0 : i32, i32
  }
  func.func @transform_2(%arg0: i32) -> (i32, i32) {
    %c0_i32 = arith.constant 0 : i32
    %c0_i32_0 = arith.constant 0 : i32
    %c0_i32_1 = arith.constant 0 : i32
    return %c0_i32, %c0_i32_0 : i32, i32
  }
  func.func @transform_3(%arg0: i32) -> (i32, i32) {
    %c0_i32 = arith.constant 0 : i32
    %c0_i32_0 = arith.constant 0 : i32
    %c0_i32_1 = arith.constant 0 : i32
    return %c0_i32, %c0_i32_0 : i32, i32
  }
  func.func @transform_4(%arg0: i32) -> (i32, i32) {
    %c0_i32 = arith.constant 0 : i32
    %c0_i32_0 = arith.constant 0 : i32
    %c0_i32_1 = arith.constant 0 : i32
    return %c0_i32, %c0_i32_0 : i32, i32
  }
  func.func @transform_5(%arg0: i32) -> (i32, i32) {
    %c0_i32 = arith.constant 0 : i32
    %c0_i32_0 = arith.constant 0 : i32
    return %arg0, %c0_i32 : i32, i32
  }
}

</mosaic_0001>

<llo_original>
// kernel: tpu_custom_call.1
$region0: #{tpu_custom_call.1}
  #allocation0 [shape = 'u32[]', space=smem, size = 0x4, offset = 0x4, fixed_abs, tag = 'smem constant byte address 0x4 - core index']
  #allocation1 [shape = 'u32[144,128]{1,0:T(1,128)}', space=vmem, size = 0x12000, scoped, tag = 'internal scratch']
  %s0 = inlined_call_operand.hbm [shape: f32[16,64], index: 0, kind: input, shape index: {}]
  %s1 = inlined_call_operand.hbm [shape: f32[32,32], index: 1, kind: input, shape index: {}]
  %s2 = inlined_call_operand.vmem [shape: f32[1,32], index: 2, kind: input, shape index: {}]
  %s3 = inlined_call_operand.hbm [shape: f32[32,32], index: 3, kind: input, shape index: {}]
  %s4 = inlined_call_operand.vmem [shape: f32[1,32], index: 4, kind: input, shape index: {}]
  %s5 = inlined_call_operand.hbm [shape: f32[16,64], index: 5, kind: output, shape index: {}]
  %s6 = sld [smem:[#allocation0]]
  $region65: #{tpu_custom_call.1} parent=0
    _
  %s8 = ssub.s32 1, %s6
  %s9 = scalar_select 0, %s8, %s6
  $region1: #{tpu_custom_call.1} parent=0
    #allocation2 [shape = 'u8[8192]{0}', space=vmem, size = 0x2000, scoped, tag = 'input window, operand 0']
    #allocation3 [shape = 's32[2]{0}', space=sflag, size = 0x8, scoped, tag = 'scoped memory for tpu_custom_call.1']
    #allocation4 [shape = 's32[2]{0}', space=sflag, size = 0x8, scoped, tag = 'scoped memory for tpu_custom_call.1']
    #allocation5 [shape = 'u8[16384]{0}', space=vmem, size = 0x4000, scoped, tag = 'input window, operand 1, single buffered']
    #allocation6 [shape = 's32[1]{0}', space=sflag, size = 0x4, scoped, tag = 'scoped memory for tpu_custom_call.1']
    #allocation7 [shape = 'u8[16384]{0}', space=vmem, size = 0x4000, scoped, tag = 'input window, operand 3, single buffered']
    #allocation8 [shape = 'u8[8192]{0}', space=vmem, size = 0x2000, scoped, tag = 'output window, operand 0']
    %10 = vsyncpa [#allocation3], 0
    %s11 = scalar_lea.sflag [#allocation3], 1
    %12 = vsyncpa %s11, 0
    %13 = vsyncpa [#allocation6], 0
    %14 = vsyncpa [#allocation4], 0
    %s15 = scalar_lea.sflag [#allocation4], 1
    %16 = vsyncpa %s15, 0
    loop: start=0, step=1, limit=4
    $region2: #{tpu_custom_call.1} parent=1 // loop_pre_header
      _
    $region3: #{tpu_custom_call.1} parent=1 // loop_header
      %s18 = sphi 0, %s22
      %p19 = scmp.ge.s32.totalorder %s18, 4
      %s28 = sphi 0, %s30
      %s31 = sphi 0, %s28
      %s32 = sphi 0, %s31
      %s48 = sphi 0, %s32
      %s52 = sphi 0, %s52
      %s54 = sphi 0, %s52
      %s55 = sphi 0, %s54
      %s69 = sphi 0, %s55
      %s73 = sphi 0, %s73
      %s75 = sphi 0, %s73
      %s76 = sphi 0, %s75
      %s90 = sphi 0, %s76
      %s94 = sphi 0, %s94
      %s96 = sphi 0, %s94
      %s97 = sphi 0, %s96
      %s111 = sphi 0, %s97
      %s115 = sphi 0, %s115
      %s117 = sphi 0, %s115
      %s118 = sphi 0, %s117
      %s132 = sphi 0, %s118
      %s138 = sphi 0, %s140
      %s141 = sphi 0, %s138
      %s142 = sphi 0, %s141
      %s158 = sphi 0, %s142
    $region4: #{tpu_custom_call.1} parent=1 // loop_header_branch
      %21 = sbr.rel (%p19) target = $region8
    $region5: #{tpu_custom_call.1} parent=1 // loop_body
      %s23 = ssub.s32 %s18, 1
      %s24 = ssub.s32 %s18, 2
      %s25 = sadd.s32 %s18, 1
      %s26 = ssub.s32 %s18, %s25
      %p27 = scmp.eq.s32.totalorder %s26, 0
      %s29 = sadd.s32 %s28, 1
      %s30 = scalar_select %p27, %s28, %s29
      %p33 = pneg %p27
      %p34 = scmp.eq.s32.totalorder %s18, 1
      %p35 = por %p33, %p34
      %p36 = scmp.ne.s32.totalorder %s28, %s31
      %p37 = scmp.eq.s32.totalorder %s18, 0
      %p38 = por %p36, %p37
      %p39 = scmp.ne.s32.totalorder %s28, %s31
      %p40 = scmp.eq.s32.totalorder %s23, 1
      %p41 = por %p39, %p40
      %p42 = scmp.ne.s32.totalorder %s31, %s32
      %p43 = scmp.eq.s32.totalorder %s23, 0
      %p44 = por %p42, %p43
      %p45 = scmp.ne.s32.totalorder %s31, %s32
      %p46 = scmp.eq.s32.totalorder %s24, 1
      %p47 = por %p45, %p46
      %p49 = scmp.ne.s32.totalorder %s32, %s48
      %p50 = scmp.eq.s32.totalorder %s24, 0
      %p51 = por %p49, %p50
      %s53 = sadd.s32 %s52, 1
      %p56 = scmp.eq.s32.totalorder %s18, 1
      %p57 = scmp.ne.s32.totalorder %s52, %s54
      %p58 = scmp.eq.s32.totalorder %s18, 0
      %p59 = por %p57, %p58
      %p60 = scmp.ne.s32.totalorder %s52, %s54
      %p61 = scmp.eq.s32.totalorder %s23, 1
      %p62 = por %p60, %p61
      %p63 = scmp.ne.s32.totalorder %s54, %s55
      %p64 = scmp.eq.s32.totalorder %s23, 0
      %p65 = por %p63, %p64
      %p66 = scmp.ne.s32.totalorder %s54, %s55
      %p67 = scmp.eq.s32.totalorder %s24, 1
      %p68 = por %p66, %p67
      %p70 = scmp.ne.s32.totalorder %s55, %s69
      %p71 = scmp.eq.s32.totalorder %s24, 0
      %p72 = por %p70, %p71
      %s74 = sadd.s32 %s73, 1
      %p77 = scmp.eq.s32.totalorder %s18, 1
      %p78 = scmp.ne.s32.totalorder %s73, %s75
      %p79 = scmp.eq.s32.totalorder %s18, 0
      %p80 = por %p78, %p79
      %p81 = scmp.ne.s32.totalorder %s73, %s75
      %p82 = scmp.eq.s32.totalorder %s23, 1
      %p83 = por %p81, %p82
      %p84 = scmp.ne.s32.totalorder %s75, %s76
      %p85 = scmp.eq.s32.totalorder %s23, 0
      %p86 = por %p84, %p85
      %p87 = scmp.ne.s32.totalorder %s75, %s76
      %p88 = scmp.eq.s32.totalorder %s24, 1
      %p89 = por %p87, %p88
      %p91 = scmp.ne.s32.totalorder %s76, %s90
      %p92 = scmp.eq.s32.totalorder %s24, 0
      %p93 = por %p91, %p92
      %s95 = sadd.s32 %s94, 1
      %p98 = scmp.eq.s32.totalorder %s18, 1
      %p99 = scmp.ne.s32.totalorder %s94, %s96
      %p100 = scmp.eq.s32.totalorder %s18, 0
      %p101 = por %p99, %p100
      %p102 = scmp.ne.s32.totalorder %s94, %s96
      %p103 = scmp.eq.s32.totalorder %s23, 1
      %p104 = por %p102, %p103
      %p105 = scmp.ne.s32.totalorder %s96, %s97
      %p106 = scmp.eq.s32.totalorder %s23, 0
      %p107 = por %p105, %p106
      %p108 = scmp.ne.s32.totalorder %s96, %s97
      %p109 = scmp.eq.s32.totalorder %s24, 1
      %p110 = por %p108, %p109
      %p112 = scmp.ne.s32.totalorder %s97, %s111
      %p113 = scmp.eq.s32.totalorder %s24, 0
      %p114 = por %p112, %p113
      %s116 = sadd.s32 %s115, 1
      %p119 = scmp.eq.s32.totalorder %s18, 1
      %p120 = scmp.ne.s32.totalorder %s115, %s117
      %p121 = scmp.eq.s32.totalorder %s18, 0
      %p122 = por %p120, %p121
      %p123 = scmp.ne.s32.totalorder %s115, %s117
      %p124 = scmp.eq.s32.totalorder %s23, 1
      %p125 = por %p123, %p124
      %p126 = scmp.ne.s32.totalorder %s117, %s118
      %p127 = scmp.eq.s32.totalorder %s23, 0
      %p128 = por %p126, %p127
      %p129 = scmp.ne.s32.totalorder %s117, %s118
      %p130 = scmp.eq.s32.totalorder %s24, 1
      %p131 = por %p129, %p130
      %p133 = scmp.ne.s32.totalorder %s118, %s132
      %p134 = scmp.eq.s32.totalorder %s24, 0
      %p135 = por %p133, %p134
      %s136 = ssub.s32 %s18, %s25
      %p137 = scmp.eq.s32.totalorder %s136, 0
      %s139 = sadd.s32 %s138, 1
      %s140 = scalar_select %p137, %s138, %s139
      %p143 = pneg %p137
      %p144 = scmp.eq.s32.totalorder %s18, 1
      %p145 = por %p143, %p144
      %p146 = scmp.ne.s32.totalorder %s138, %s141
      %p147 = scmp.eq.s32.totalorder %s18, 0
      %p148 = por %p146, %p147
      %p149 = scmp.ne.s32.totalorder %s138, %s141
      %p150 = scmp.eq.s32.totalorder %s23, 1
      %p151 = por %p149, %p150
      %p152 = scmp.ne.s32.totalorder %s141, %s142
      %p153 = scmp.eq.s32.totalorder %s23, 0
      %p154 = por %p152, %p153
      %p155 = scmp.ne.s32.totalorder %s141, %s142
      %p156 = scmp.eq.s32.totalorder %s24, 1
      %p157 = por %p155, %p156
      %p159 = scmp.ne.s32.totalorder %s142, %s158
      %p160 = scmp.eq.s32.totalorder %s24, 0
      %p161 = por %p159, %p160
      %p162 = scmp.le.s32.totalorder 1, %s18
      %p163 = scmp.lt.s32.totalorder %s18, 3
      %p164 = pnand %p162, %p163
      %p165 = pneg %p164
      // Predicated region
      $region9: #{tpu_custom_call.1} parent=5 // pred_check
        _
      $region10: #{tpu_custom_call.1} parent=5 // pred_check_branch
        %167 = sbr.rel (%p164) target = $region12
      $region11: #{tpu_custom_call.1} parent=5 // pred_region
        %s168 = ssub.s32 %s18, 1
        // Predicated region
        $region13: #{tpu_custom_call.1} parent=11 // pred_check
          %p169 = pneg %p65
        $region14: #{tpu_custom_call.1} parent=11 // pred_check_branch
          %171 = sbr.rel (%p169) target = $region16
        $region15: #{tpu_custom_call.1} parent=11 // pred_region
          %s173 = ssub.s32 512, 512
          %174 = vsyncadd [#allocation6], %s173
          %s175 = sshll.u32 [#allocation5], 4
          %s176 = int_to_ptr.vmem [resolvable:$true] %s175
          %181 = dma.hbm_to_vmem [thread:$0]  %s1, 512, %s176, [#allocation6], 128, 128, 8
        $region16: #{tpu_custom_call.1} parent=11 // pred_fallthru
          _
        // Predicated region
        $region17: #{tpu_custom_call.1} parent=11 // pred_check
          %p182 = pneg %p86
        $region18: #{tpu_custom_call.1} parent=11 // pred_check_branch
          %184 = sbr.rel (%p182) target = $region20
        $region19: #{tpu_custom_call.1} parent=11 // pred_region
          _
        $region20: #{tpu_custom_call.1} parent=11 // pred_fallthru
          _
        // Predicated region
        $region21: #{tpu_custom_call.1} parent=11 // pred_check
          %p185 = pneg %p107
        $region22: #{tpu_custom_call.1} parent=11 // pred_check_branch
          %187 = sbr.rel (%p185) target = $region24
        $region23: #{tpu_custom_call.1} parent=11 // pred_region
          %s189 = ssub.s32 512, 512
          %190 = vsyncadd [#allocation6], %s189
          %s191 = sshll.u32 [#allocation7], 4
          %s192 = int_to_ptr.vmem [resolvable:$true] %s191
          %197 = dma.hbm_to_vmem [thread:$0]  %s3, 512, %s192, [#allocation6], 128, 128, 8
        $region24: #{tpu_custom_call.1} parent=11 // pred_fallthru
          _
        // Predicated region
        $region25: #{tpu_custom_call.1} parent=11 // pred_check
          %p198 = pneg %p128
        $region26: #{tpu_custom_call.1} parent=11 // pred_check_branch
          %200 = sbr.rel (%p198) target = $region28
        $region27: #{tpu_custom_call.1} parent=11 // pred_region
          _
        $region28: #{tpu_custom_call.1} parent=11 // pred_fallthru
          _
      $region12: #{tpu_custom_call.1} parent=5 // pred_fallthru
        _
      %p201 = scmp.lt.s32.totalorder %s18, 2
      // Predicated region
      $region29: #{tpu_custom_call.1} parent=5 // pred_check
        %p202 = pneg %p201
      $region30: #{tpu_custom_call.1} parent=5 // pred_check_branch
        %204 = sbr.rel (%p202) target = $region32
      $region31: #{tpu_custom_call.1} parent=5 // pred_region
        // Predicated region
        $region33: #{tpu_custom_call.1} parent=31 // pred_check
          %p205 = pneg %p38
        $region34: #{tpu_custom_call.1} parent=31 // pred_check_branch
          %207 = sbr.rel (%p205) target = $region36
        $region35: #{tpu_custom_call.1} parent=31 // pred_region
          %s208 = sand.u32 %s28, 1
          %s209 = scalar_lea.sflag [#allocation3], %s208
          %s210 = sand.u32 %s28, 1
          %s211 = smul.addr %s210, 8
          %s212 = scalar_lea.vmem [#allocation2], %s211
          %s214 = ssub.s32 128, 128
          %215 = vsyncadd %s209, %s214
          %s216 = smul.addr %s18, 128
          %s217 = scalar_lea.hbm %s0, %s216
          %s219 = sshll.u32 %s212, 4
          %s220 = int_to_ptr.vmem [resolvable:$true] %s219
          %222 = dma.hbm_to_vmem [thread:$0]  %s217, 128, %s220, %s209
        $region36: #{tpu_custom_call.1} parent=31 // pred_fallthru
          _
      $region32: #{tpu_custom_call.1} parent=5 // pred_fallthru
        _
      %p223 = scmp.le.s32.totalorder 1, %s18
      %p224 = scmp.lt.s32.totalorder %s18, 3
      %p225 = pnand %p223, %p224
      %p226 = pneg %p225
      // Predicated region
      $region37: #{tpu_custom_call.1} parent=5 // pred_check
        _
      $region38: #{tpu_custom_call.1} parent=5 // pred_check_branch
        %228 = sbr.rel (%p225) target = $region40
      $region39: #{tpu_custom_call.1} parent=5 // pred_region
        %s229 = ssub.s32 %s18, 1
        %s230 = sand.u32 %s31, 1
        %s231 = scalar_lea.sflag [#allocation3], %s230
        %s232 = sand.u32 %s31, 1
        %s233 = smul.addr %s232, 8
        %s234 = scalar_lea.vmem [#allocation2], %s233
        // Predicated region
        $region41: #{tpu_custom_call.1} parent=39 // pred_check
          %p235 = pneg %p44
        $region42: #{tpu_custom_call.1} parent=39 // pred_check_branch
          %237 = sbr.rel (%p235) target = $region44
        $region43: #{tpu_custom_call.1} parent=39 // pred_region
          %238 = dma.done %s231, 128
        $region44: #{tpu_custom_call.1} parent=39 // pred_fallthru
          _
        // Predicated region
        $region45: #{tpu_custom_call.1} parent=39 // pred_check
          %p239 = pneg %p65
        $region46: #{tpu_custom_call.1} parent=39 // pred_check_branch
          %241 = sbr.rel (%p239) target = $region48
        $region47: #{tpu_custom_call.1} parent=39 // pred_region
          %242 = dma.done [#allocation6], 512
        $region48: #{tpu_custom_call.1} parent=39 // pred_fallthru
          _
        // Predicated region
        $region49: #{tpu_custom_call.1} parent=39 // pred_check
          %p243 = pneg %p107
        $region50: #{tpu_custom_call.1} parent=39 // pred_check_branch
          %245 = sbr.rel (%p243) target = $region52
        $region51: #{tpu_custom_call.1} parent=39 // pred_region
          %246 = dma.done [#allocation6], 512
        $region52: #{tpu_custom_call.1} parent=39 // pred_fallthru
          _
        %s247 = sand.u32 %s31, 1
        %s248 = scalar_lea.sflag [#allocation3], %s247
        %s249 = sand.u32 %s31, 1
        %s250 = smul.addr %s249, 8
        %s251 = scalar_lea.vmem [#allocation2], %s250
        %p252 = pneg %p44
        %p253 = pneg %p41
        %p254 = pneg %p65
        %p255 = pneg %p62
        %p256 = pneg %p86
        %p257 = pneg %p83
        %p258 = pneg %p107
        %p259 = pneg %p104
        %p260 = pneg %p128
        %p261 = pneg %p125
        %p262 = pneg %p154
        %p263 = pneg %p151
        %s264 = sand.u32 %s141, 1
        %s265 = scalar_lea.sflag [#allocation4], %s264
        %s266 = sand.u32 %s141, 1
        %s267 = smul.addr %s266, 8
        %s268 = scalar_lea.vmem [#allocation8], %s267
        %v269 = vld [vmem:[%s234] sm:$0xff]
        %v270 = vld [vmem:[#allocation5] sm:$0xff]
        %v271 = vld [vmem:[#allocation5 + $0x8] sm:$0xff]
        %v272 = vld [vmem:[#allocation5 + $0x10] sm:$0xff]
        %v273 = vld [vmem:[#allocation5 + $0x18] sm:$0xff]
        %275 = vrot.lane.b32.xlu0 %v269, 96
        %v276 = vpop.permute.xlu0 %275
        %vm277 = vcmask 261120
        %v278 = vsel %vm277, %v276, 0
        %280 = vmatprep.subr.mxu0 0.0
        %281 = vmatpush1.msra.mxu0 0.0
        %282 = vmatprep.subr.mxu0 0.0
        %283 = vmatpush1.msra.mxu0 0.0
        %284 = vmatprep.subr.mxu0 0.0
        %285 = vmatpush1.msra.mxu0 0.0
        %286 = vmatprep.subr.mxu0 0.0
        %287 = vmatpush1.msra.mxu0 0.0
        %288 = vmatprep.subr.mxu0 0.0
        %289 = vmatpush1.msra.mxu0 0.0
        %290 = vmatprep.subr.mxu0 0.0
        %291 = vmatpush1.msra.mxu0 0.0
        %292 = vmatprep.subr.mxu0 0.0
        %293 = vmatpush1.msra.mxu0 0.0
        %294 = vmatprep.subr.mxu0 0.0
        %295 = vmatpush1.msra.mxu0 0.0
        %296 = vmatprep.subr.mxu0 0.0
        %297 = vmatpush1.msra.mxu0 0.0
        %298 = vmatprep.subr.mxu0 0.0
        %299 = vmatpush1.msra.mxu0 0.0
        %300 = vmatprep.subr.mxu0 0.0
        %301 = vmatpush1.msra.mxu0 0.0
        %302 = vmatprep.subr.mxu0 0.0
        %303 = vmatpush1.msra.mxu0 0.0
        %304 = vmatprep.subr.mxu0 0.0
        %305 = vmatpush1.msra.mxu0 %v273
        %306 = vmatprep.subr.mxu0 0.0
        %307 = vmatpush1.msra.mxu0 %v272
        %308 = vmatprep.subr.mxu0 0.0
        %309 = vmatpush1.msra.mxu0 %v271
        %310 = vmatprep.subr.mxu0 0.0
        %311 = vmatpush1.msra.mxu0 %v270
        %312 = vmatprep.subr.mxu0 0.0
        %313 = vmatpush2.msra.mxu0 0.0
        %314 = vmatprep.subr.mxu0 0.0
        %315 = vmatpush2.msra.mxu0 0.0
        %316 = vmatprep.subr.mxu0 0.0
        %317 = vmatpush2.msra.mxu0 0.0
        %318 = vmatprep.subr.mxu0 0.0
        %319 = vmatpush2.msra.mxu0 0.0
        %320 = vmatprep.subr.mxu0 0.0
        %321 = vmatpush2.msra.mxu0 0.0
        %322 = vmatprep.subr.mxu0 0.0
        %323 = vmatpush2.msra.mxu0 0.0
        %324 = vmatprep.subr.mxu0 0.0
        %325 = vmatpush2.msra.mxu0 0.0
        %326 = vmatprep.subr.mxu0 0.0
        %327 = vmatpush2.msra.mxu0 0.0
        %328 = vmatprep.subr.mxu0 0.0
        %329 = vmatpush2.msra.mxu0 0.0
        %330 = vmatprep.subr.mxu0 0.0
        %331 = vmatpush2.msra.mxu0 0.0
        %332 = vmatprep.subr.mxu0 0.0
        %333 = vmatpush2.msra.mxu0 0.0
        %334 = vmatprep.subr.mxu0 0.0
        %335 = vmatpush2.msra.mxu0 0.0
        %336 = vmatprep.subr.mxu0 0.0
        %337 = vmatpush2.msra.mxu0 0.0
        %338 = vmatprep.subr.mxu0 0.0
        %339 = vmatpush2.msra.mxu0 0.0
        %340 = vmatprep.subr.mxu0 0.0
        %341 = vmatpush2.msra.mxu0 0.0
        %342 = vmatprep.subr.mxu0 0.0
        %343 = vmatpush2.msra.mxu0 0.0
        %344 = vmatprep.mubr.f32.mxu0 0.0
        %345 = vmatmul.mubr.f32.gmra.mxu0 %v278
        %v346 = vpop.f32.mrf.mxu0
        %v347 = vadd.f32 0.0, %v346
        %v348 = vpop.f32.mrf.mxu0
        %349 = vdwg.mxu0
        %v350 = vadd.f32 %v269, %v347
        %v351 = vld [vmem:[%s2] sm:$0x1]
        %v353 = vlaneseq
        %v354 = vshrl.u32 %v353, 7
        %v355 = vsub.s32 0, %v354
        %v356 = vrot.slane %v351, %v355
        %v358 = vadd.f32 %v350, %v356
        %359 = vst.msk [vmem:[%s268] sm:$0xff] %vm277, %v358
        %v360 = vld [vmem:[#allocation7] sm:$0xff]
        %v361 = vld [vmem:[#allocation7 + $0x8] sm:$0xff]
        %v362 = vld [vmem:[#allocation7 + $0x10] sm:$0xff]
        %v363 = vld [vmem:[#allocation7 + $0x18] sm:$0xff]
        %v365 = vsel %vm277, %v358, 0
        %367 = vmatprep.subr.mxu0 0.0
        %368 = vmatpush1.msra.mxu0 0.0
        %369 = vmatprep.subr.mxu0 0.0
        %370 = vmatpush1.msra.mxu0 0.0
        %371 = vmatprep.subr.mxu0 0.0
        %372 = vmatpush1.msra.mxu0 0.0
        %373 = vmatprep.subr.mxu0 0.0
        %374 = vmatpush1.msra.mxu0 0.0
        %375 = vmatprep.subr.mxu0 0.0
        %376 = vmatpush1.msra.mxu0 0.0
        %377 = vmatprep.subr.mxu0 0.0
        %378 = vmatpush1.msra.mxu0 0.0
        %379 = vmatprep.subr.mxu0 0.0
        %380 = vmatpush1.msra.mxu0 0.0
        %381 = vmatprep.subr.mxu0 0.0
        %382 = vmatpush1.msra.mxu0 0.0
        %383 = vmatprep.subr.mxu0 0.0
        %384 = vmatpush1.msra.mxu0 0.0
        %385 = vmatprep.subr.mxu0 0.0
        %386 = vmatpush1.msra.mxu0 0.0
        %387 = vmatprep.subr.mxu0 0.0
        %388 = vmatpush1.msra.mxu0 0.0
        %389 = vmatprep.subr.mxu0 0.0
        %390 = vmatpush1.msra.mxu0 0.0
        %391 = vmatprep.subr.mxu0 0.0
        %392 = vmatpush1.msra.mxu0 %v363
        %393 = vmatprep.subr.mxu0 0.0
        %394 = vmatpush1.msra.mxu0 %v362
        %395 = vmatprep.subr.mxu0 0.0
        %396 = vmatpush1.msra.mxu0 %v361
        %397 = vmatprep.subr.mxu0 0.0
        %398 = vmatpush1.msra.mxu0 %v360
        %399 = vmatprep.subr.mxu0 0.0
        %400 = vmatpush2.msra.mxu0 0.0
        %401 = vmatprep.subr.mxu0 0.0
        %402 = vmatpush2.msra.mxu0 0.0
        %403 = vmatprep.subr.mxu0 0.0
        %404 = vmatpush2.msra.mxu0 0.0
        %405 = vmatprep.subr.mxu0 0.0
        %406 = vmatpush2.msra.mxu0 0.0
        %407 = vmatprep.subr.mxu0 0.0
        %408 = vmatpush2.msra.mxu0 0.0
        %409 = vmatprep.subr.mxu0 0.0
        %410 = vmatpush2.msra.mxu0 0.0
        %411 = vmatprep.subr.mxu0 0.0
        %412 = vmatpush2.msra.mxu0 0.0
        %413 = vmatprep.subr.mxu0 0.0
        %414 = vmatpush2.msra.mxu0 0.0
        %415 = vmatprep.subr.mxu0 0.0
        %416 = vmatpush2.msra.mxu0 0.0
        %417 = vmatprep.subr.mxu0 0.0
        %418 = vmatpush2.msra.mxu0 0.0
        %419 = vmatprep.subr.mxu0 0.0
        %420 = vmatpush2.msra.mxu0 0.0
        %421 = vmatprep.subr.mxu0 0.0
        %422 = vmatpush2.msra.mxu0 0.0
        %423 = vmatprep.subr.mxu0 0.0
        %424 = vmatpush2.msra.mxu0 0.0
        %425 = vmatprep.subr.mxu0 0.0
        %426 = vmatpush2.msra.mxu0 0.0
        %427 = vmatprep.subr.mxu0 0.0
        %428 = vmatpush2.msra.mxu0 0.0
        %429 = vmatprep.subr.mxu0 0.0
        %430 = vmatpush2.msra.mxu0 0.0
        %431 = vmatprep.mubr.f32.mxu0 0.0
        %432 = vmatmul.mubr.f32.gmra.mxu0 %v365
        %v433 = vpop.f32.mrf.mxu0
        %v434 = vadd.f32 0.0, %v433
        %v435 = vpop.f32.mrf.mxu0
        %436 = vdwg.mxu0
        %438 = vrot.lane.b32.xlu0 %v434, 32
        %v439 = vpop.permute.xlu0 %438
        %v441 = vadd.f32 %v269, %v439
        %v442 = vld [vmem:[%s4] sm:$0x1]
        %v444 = vlaneseq
        %v445 = vshrl.u32 %v444, 7
        %v446 = vsub.s32 0, %v445
        %v447 = vrot.slane %v442, %v446
        %448 = vrot.lane.b32.xlu0 %v447, 32
        %v449 = vpop.permute.xlu0 %448
        %v451 = vadd.f32 %v441, %v449
        %vm452 = vcmask 523520
        %453 = vst.msk [vmem:[%s268] sm:$0xff] %vm452, %v451
        %s454 = sand.u32 %s141, 1
        %s455 = scalar_lea.sflag [#allocation4], %s454
        %s456 = sand.u32 %s141, 1
        %s457 = smul.addr %s456, 8
        %s458 = scalar_lea.vmem [#allocation8], %s457
        // Predicated region
        $region53: #{tpu_custom_call.1} parent=39 // pred_check
          %p459 = pneg %p151
        $region54: #{tpu_custom_call.1} parent=39 // pred_check_branch
          %461 = sbr.rel (%p459) target = $region56
        $region55: #{tpu_custom_call.1} parent=39 // pred_region
          %s463 = ssub.s32 128, 128
          %464 = vsyncadd %s455, %s463
          %s465 = smul.addr %s23, 128
          %s466 = scalar_lea.hbm %s5, %s465
          %s468 = sshll.u32 %s458, 4
          %s469 = int_to_ptr.vmem [resolvable:$true] %s468
          %471 = dma.vmem_to_hbm [thread:$0]  %s469, 128, %s466, %s455
        $region56: #{tpu_custom_call.1} parent=39 // pred_fallthru
          _
      $region40: #{tpu_custom_call.1} parent=5 // pred_fallthru
        _
      %p472 = scmp.le.s32.totalorder 2, %s18
      // Predicated region
      $region57: #{tpu_custom_call.1} parent=5 // pred_check
        %p473 = pneg %p472
      $region58: #{tpu_custom_call.1} parent=5 // pred_check_branch
        %475 = sbr.rel (%p473) target = $region60
      $region59: #{tpu_custom_call.1} parent=5 // pred_region
        %s476 = ssub.s32 %s18, 2
        // Predicated region
        $region61: #{tpu_custom_call.1} parent=59 // pred_check
          %p477 = pneg %p157
        $region62: #{tpu_custom_call.1} parent=59 // pred_check_branch
          %479 = sbr.rel (%p477) target = $region64
        $region63: #{tpu_custom_call.1} parent=59 // pred_region
          %s480 = sand.u32 %s142, 1
          %s481 = scalar_lea.sflag [#allocation4], %s480
          %s482 = sand.u32 %s142, 1
          %s483 = smul.addr %s482, 8
          %s484 = scalar_lea.vmem [#allocation8], %s483
          %485 = dma.done %s481, 128
        $region64: #{tpu_custom_call.1} parent=59 // pred_fallthru
          _
      $region60: #{tpu_custom_call.1} parent=5 // pred_fallthru
        _
    $region6: #{tpu_custom_call.1} parent=1 // loop_footer
      %s22 = sadd.s32 1, %s18
    $region7: #{tpu_custom_call.1} parent=1 // loop_footer_branch
      %17 = sbr.rel target = $region3
    $region8: #{tpu_custom_call.1} parent=1 // loop_exit
      _
    %486 = vsyncpa [#allocation3], 1
    %s487 = scalar_lea.sflag [#allocation3], 1
    %488 = vsyncpa %s487, 1
    %489 = vsyncpa [#allocation6], 1
    %490 = vsyncpa [#allocation4], 1
    %s491 = scalar_lea.sflag [#allocation4], 1
    %492 = vsyncpa %s491, 1

</llo_original>
